<compile_context>
chip_gen: v6e
topology: v6e:2x2x1
jax: 0.10.0
libtpu: 0.0.40
codegen_flags: <defaults>
</compile_context>

<pallas_src>
import functools

import jax
import jax.numpy as jnp
from jax.experimental import pallas as pl
from jax.experimental.pallas import tpu as pltpu


_NEG_BIG = -1e30  # acts as -inf for padded softmax columns (exp underflows to 0); f32 only


def _round_up(x: int, m: int) -> int:
    return ((x + m - 1) // m) * m


def classifier_kernel(num_labels, x_ref, w1_ref, b1_ref, w2_ref, b2_ref, o_ref):
    # Hidden layer: Linear + LeakyReLU(0.2)  (maximum form: slope < 1)
    x = x_ref[...]
    h = jnp.dot(x, w1_ref[...], preferred_element_type=jnp.float32) + b1_ref[...]
    h = jnp.maximum(h, 0.2 * h)

    # Logit layer on the lane-padded (128-wide) label axis; pad columns carry a
    # ~-inf bias so they contribute exp()=0 below.  Keep this path in f32.
    logits = jnp.dot(h, w2_ref[...], preferred_element_type=jnp.float32) + b2_ref[...]

    # Numerically stable softmax over the lane-dense label axis (exact divide;
    # compute is not the bottleneck and rows sum to 1 at f32 accuracy).
    m = jnp.max(logits, axis=-1, keepdims=True)
    e = jnp.exp(logits - m)
    s = jnp.sum(e, axis=-1, keepdims=True)
    probs = e / s

    # Store only the real label columns -> 64x less HBM writeback than a
    # padded (TB,128) store; the masked store cost is negligible here.
    o_ref[...] = probs[:, :num_labels].astype(o_ref.dtype)


def prepare_params(w1, b1, w2, b2):
    """Pad W2/b2 to a 128-lane label axis ONCE (outside the per-call path)."""
    H, L = w2.shape
    LP = _round_up(max(L, 1), 128)
    w2p = jnp.zeros((H, LP), w2.dtype).at[:, :L].set(w2)
    b2p = jnp.full((1, LP), _NEG_BIG, b2.dtype).at[:, :L].set(b2)
    return {"w1": w1, "b1": b1, "w2p": w2p, "b2p": b2p, "num_labels": L}


def classifier_forward(x, params, *, block_rows=2048):
    """x: [B, D]; params from prepare_params -> softmax probabilities [B, L]."""
    B, D = x.shape
    w1, b1, w2p, b2p = params["w1"], params["b1"], params["w2p"], params["b2p"]
    L = params["num_labels"]
    H = w1.shape[1]
    LP = w2p.shape[1]

    # Row tile: big to amortize per-grid-step overhead; collapse to one step
    # for small B.  No wrapper-side padding of x — the ragged last block is
    # clipped on writeback (row-wise compute only, so this is safe).
    TB = _round_up(min(block_rows, _round_up(B, 8)), 8)
    grid = (pl.cdiv(B, TB),)

    n_rows = grid[0] * TB  # rows actually computed (incl. ragged tail)
    flops = 2 * n_rows * (D * H + H * LP)
    bytes_accessed = 4 * (B * D + D * H + H + H * LP + LP + B * L)

    out = pl.pallas_call(
        functools.partial(classifier_kernel, L),
        out_shape=jax.ShapeDtypeStruct((B, L), jnp.float32),
        grid_spec=pltpu.PrefetchScalarGridSpec(
            num_scalar_prefetch=0,
            grid=grid,
            in_specs=[
                # x: one row tile per grid step (double-buffered by the pipeline)
                pl.BlockSpec((TB, D), lambda i: (i, 0)),
                # weights / biases: constant index_map -> VMEM-resident across steps
                pl.BlockSpec((D, H), lambda i: (0, 0)),
                pl.BlockSpec((1, H), lambda i: (0, 0)),
                pl.BlockSpec((H, LP), lambda i: (0, 0)),
                pl.BlockSpec((1, LP), lambda i: (0, 0)),
            ],
            # Only the real L label columns are written back to HBM.
            out_specs=pl.BlockSpec((TB, L), lambda i: (i, 0)),
        ),
        compiler_params=pltpu.CompilerParams(
            # batch tiles are independent -> v7x's 2 TensorCores split them
            dimension_semantics=("parallel",),
        ),
        cost_estimate=pl.CostEstimate(
            flops=flops,
            transcendentals=n_rows * LP,
            bytes_accessed=bytes_accessed,
        ),
    )(x, w1, b1, w2p, b2p)

    return out


def reference_forward(x, w1, b1, w2, b2):
    h = x @ w1 + b1
    h = jnp.where(h >= 0.0, h, 0.2 * h)
    logits = h @ w2 + b2
    return jax.nn.softmax(logits, axis=-1)


if __name__ == "__main__":
    # Small shapes consistent with the module: input_size=32, hidden_sizes=[32],
    # num_labels=2.
    D, H, L = 32, 32, 2

    key = jax.random.PRNGKey(0)
    kx, kw1, kb1, kw2, kb2, kx2 = jax.random.split(key, 6)

    # Deterministic parameter init (PyTorch-Linear-style uniform +/- 1/sqrt(fan_in))
    lim1 = 1.0 / (D ** 0.5)
    w1 = jax.random.uniform(kw1, (D, H), jnp.float32, -lim1, lim1)
    b1 = jax.random.uniform(kb1, (1, H), jnp.float32, -lim1, lim1)
    lim2 = 1.0 / (H ** 0.5)
    w2 = jax.random.uniform(kw2, (H, L), jnp.float32, -lim2, lim2)
    b2 = jax.random.uniform(kb2, (1, L), jnp.float32, -lim2, lim2)

    params = prepare_params(w1, b1, w2, b2)  # one-time lane padding of W2/b2

    # --- test 1: tiny batch, single grid step, ragged tile (13 -> TB=16) -----
    B1 = 13
    x1 = jax.random.normal(kx, (B1, D), dtype=jnp.float32)
    out1 = jax.block_until_ready(classifier_forward(x1, params))
    ref1 = reference_forward(x1, w1, b1, w2, b2)
    assert out1.shape == (B1, L), f"bad shape {out1.shape}"
    assert jnp.allclose(out1, ref1, atol=3e-5, rtol=3e-5), "mismatch vs reference (small B)"
    assert jnp.allclose(jnp.sum(out1, axis=-1), 1.0, atol=3e-5), "softmax rows must sum to 1"

    # --- test 2: larger batch, multi-step grid with ragged last tile ---------
    B2 = 5000
    x2 = jax.random.normal(kx2, (B2, D), dtype=jnp.float32)
    out2 = jax.block_until_ready(classifier_forward(x2, params, block_rows=2048))
    ref2 = reference_forward(x2, w1, b1, w2, b2)
    assert out2.shape == (B2, L), f"bad shape {out2.shape}"
    assert jnp.allclose(out2, ref2, atol=3e-5, rtol=3e-5), "mismatch vs reference (large B)"

    print("KERNEL_OK")
</pallas_src>

<mosaic_0001>
module attributes {stable_mosaic.version = 11 : i64} {
  func.func @classifier_kernel(%arg0: i32, %arg1: memref<16x32xf32, #tpu.memory_space<vmem>>, %arg2: memref<32x32xf32, #tpu.memory_space<vmem>>, %arg3: memref<1x32xf32, #tpu.memory_space<vmem>>, %arg4: memref<32x128xf32, #tpu.memory_space<vmem>>, %arg5: memref<1x128xf32, #tpu.memory_space<vmem>>, %arg6: memref<16x2xf32, #tpu.memory_space<vmem>>) attributes {dimension_semantics = [#tpu.dimension_semantics<parallel>], iteration_bounds = array<i64: 1>, scalar_prefetch = 0 : i64, scratch_operands = 0 : i64, tpu.core_type = #tpu.core_type<tc>, window_params = [{transform_indices = @transform_0, window_bounds = array<i64: 16, 32>}, {pipeline_mode = #tpu.pipeline_mode<synchronous>, transform_indices = @transform_1, window_bounds = array<i64: 32, 32>}, {pipeline_mode = #tpu.pipeline_mode<synchronous>, transform_indices = @transform_2, window_bounds = array<i64: 1, 32>}, {pipeline_mode = #tpu.pipeline_mode<synchronous>, transform_indices = @transform_3, window_bounds = array<i64: 32, 128>}, {pipeline_mode = #tpu.pipeline_mode<synchronous>, transform_indices = @transform_4, window_bounds = array<i64: 1, 128>}, {transform_indices = @transform_5, window_bounds = array<i64: 16, 2>}]} {
    %c0 = arith.constant 0 : index
    %c0_0 = arith.constant 0 : index
    %0 = vector.load %arg1[%c0, %c0_0] : memref<16x32xf32, #tpu.memory_space<vmem>>, vector<16x32xf32>
    %c0_1 = arith.constant 0 : index
    %c0_2 = arith.constant 0 : index
    %1 = vector.load %arg2[%c0_1, %c0_2] : memref<32x32xf32, #tpu.memory_space<vmem>>, vector<32x32xf32>
    %cst = arith.constant dense<0.000000e+00> : vector<16x32xf32>
    %2 = tpu.matmul %0, %1, %cst {dimension_numbers = #tpu.dot_dimension_numbers<[1], [0], [0], [1], [0, 0, 1, 1], [], []>} : vector<16x32xf32>, vector<32x32xf32>, vector<16x32xf32> -> vector<16x32xf32>
    %c0_3 = arith.constant 0 : index
    %c0_4 = arith.constant 0 : index
    %3 = vector.load %arg3[%c0_3, %c0_4] : memref<1x32xf32, #tpu.memory_space<vmem>>, vector<1x32xf32>
    %4 = vector.broadcast %3 : vector<1x32xf32> to vector<16x32xf32>
    %5 = arith.addf %2, %4 : vector<16x32xf32>
    %cst_5 = arith.constant 2.000000e-01 : f32
    %6 = vector.broadcast %cst_5 : f32 to vector<16x32xf32>
    %7 = arith.mulf %6, %5 : vector<16x32xf32>
    %8 = arith.maximumf %5, %7 : vector<16x32xf32>
    %c0_6 = arith.constant 0 : index
    %c0_7 = arith.constant 0 : index
    %9 = vector.load %arg4[%c0_6, %c0_7] : memref<32x128xf32, #tpu.memory_space<vmem>>, vector<32x128xf32>
    %cst_8 = arith.constant dense<0.000000e+00> : vector<16x128xf32>
    %10 = tpu.matmul %8, %9, %cst_8 {dimension_numbers = #tpu.dot_dimension_numbers<[1], [0], [0], [1], [0, 0, 1, 1], [], []>} : vector<16x32xf32>, vector<32x128xf32>, vector<16x128xf32> -> vector<16x128xf32>
    %c0_9 = arith.constant 0 : index
    %c0_10 = arith.constant 0 : index
    %11 = vector.load %arg5[%c0_9, %c0_10] : memref<1x128xf32, #tpu.memory_space<vmem>>, vector<1x128xf32>
    %12 = vector.broadcast %11 : vector<1x128xf32> to vector<16x128xf32>
    %13 = arith.addf %10, %12 : vector<16x128xf32>
    %cst_11 = arith.constant dense<0xFF800000> : vector<16xf32>
    %14 = vector.multi_reduction <maximumf>, %13, %cst_11 [1] : vector<16x128xf32> to vector<16xf32>
    %15 = vector.shape_cast %14 : vector<16xf32> to vector<16x1xf32>
    %16 = vector.broadcast %15 : vector<16x1xf32> to vector<16x128xf32>
    %17 = arith.subf %13, %16 : vector<16x128xf32>
    %18 = math.exp %17 : vector<16x128xf32>
    %cst_12 = arith.constant dense<0.000000e+00> : vector<16xf32>
    %19 = vector.multi_reduction <add>, %18, %cst_12 [1] : vector<16x128xf32> to vector<16xf32>
    %20 = vector.shape_cast %19 : vector<16xf32> to vector<16x1xf32>
    %21 = vector.broadcast %20 : vector<16x1xf32> to vector<16x128xf32>
    %22 = arith.divf %18, %21 : vector<16x128xf32>
    %23 = vector.extract_strided_slice %22 {offsets = [0, 0], sizes = [16, 2], strides = [1, 1]} : vector<16x128xf32> to vector<16x2xf32>
    %c0_13 = arith.constant 0 : index
    %c0_14 = arith.constant 0 : index
    %24 = vector.load %arg6[%c0_13, %c0_14] : memref<16x2xf32, #tpu.memory_space<vmem>>, vector<16x2xf32>
    tpu.vector_store %arg6[%c0_13, %c0_14], %23 {strides = array<i32>} : memref<16x2xf32, #tpu.memory_space<vmem>>, vector<16x2xf32>,
    return
  }
  func.func @transform_0(%arg0: i32) -> (i32, i32) {
    %c0_i32 = arith.constant 0 : i32
    %c0_i32_0 = arith.constant 0 : i32
    return %arg0, %c0_i32 : i32, i32
  }
  func.func @transform_1(%arg0: i32) -> (i32, i32) {
    %c0_i32 = arith.constant 0 : i32
    %c0_i32_0 = arith.constant 0 : i32
    %c0_i32_1 = arith.constant 0 : i32
    return %c0_i32, %c0_i32_0 : i32, i32
  }
  func.func @transform_2(%arg0: i32) -> (i32, i32) {
    %c0_i32 = arith.constant 0 : i32
    %c0_i32_0 = arith.constant 0 : i32
    %c0_i32_1 = arith.constant 0 : i32
    return %c0_i32, %c0_i32_0 : i32, i32
  }
  func.func @transform_3(%arg0: i32) -> (i32, i32) {
    %c0_i32 = arith.constant 0 : i32
    %c0_i32_0 = arith.constant 0 : i32
    %c0_i32_1 = arith.constant 0 : i32
    return %c0_i32, %c0_i32_0 : i32, i32
  }
  func.func @transform_4(%arg0: i32) -> (i32, i32) {
    %c0_i32 = arith.constant 0 : i32
    %c0_i32_0 = arith.constant 0 : i32
    %c0_i32_1 = arith.constant 0 : i32
    return %c0_i32, %c0_i32_0 : i32, i32
  }
  func.func @transform_5(%arg0: i32) -> (i32, i32) {
    %c0_i32 = arith.constant 0 : i32
    %c0_i32_0 = arith.constant 0 : i32
    return %arg0, %c0_i32 : i32, i32
  }
}

</mosaic_0001>

<llo_original>
// kernel: tpu_custom_call.1
$region0: #{tpu_custom_call.1}
  #allocation0 [shape = 'u32[]', space=smem, size = 0x4, offset = 0x4, fixed_abs, tag = 'smem constant byte address 0x4 - core index']
  #allocation1 [shape = 'u32[144,128]{1,0:T(1,128)}', space=vmem, size = 0x12000, scoped, tag = 'internal scratch']
  %s0 = inlined_call_operand.hbm [shape: f32[13,32], index: 0, kind: input, shape index: {}]
  %s1 = inlined_call_operand.hbm [shape: f32[32,32], index: 1, kind: input, shape index: {}]
  %s2 = inlined_call_operand.vmem [shape: f32[1,32], index: 2, kind: input, shape index: {}]
  %s3 = inlined_call_operand.hbm [shape: f32[32,128], index: 3, kind: input, shape index: {}]
  %s4 = inlined_call_operand.vmem [shape: f32[1,128], index: 4, kind: input, shape index: {}]
  %s5 = inlined_call_operand.vmem [shape: f32[13,2], index: 5, kind: output, shape index: {}]
  %s6 = sld [smem:[#allocation0]]
  $region42: #{tpu_custom_call.1} parent=0
    _
  %s8 = ssub.s32 1, %s6
  %s9 = scalar_select 0, %s8, %s6
  $region1: #{tpu_custom_call.1} parent=0
    #allocation2 [shape = 'u8[8192]{0}', space=vmem, size = 0x2000, scoped, tag = 'input window, operand 0, single buffered']
    #allocation3 [shape = 's32[1]{0}', space=sflag, size = 0x4, scoped, tag = 'scoped memory for tpu_custom_call.1']
    #allocation4 [shape = 'u8[16384]{0}', space=vmem, size = 0x4000, scoped, tag = 'input window, operand 1, single buffered']
    #allocation5 [shape = 's32[1]{0}', space=sflag, size = 0x4, scoped, tag = 'scoped memory for tpu_custom_call.1']
    #allocation6 [shape = 'u8[16384]{0}', space=vmem, size = 0x4000, scoped, tag = 'input window, operand 3, single buffered']
    %10 = vsyncpa [#allocation3], 0
    %11 = vsyncpa [#allocation5], 0
    // Predicated region
    $region2: #{tpu_custom_call.1} parent=1 // pred_check
      _
    $region3: #{tpu_custom_call.1} parent=1 // pred_check_branch
      %13 = sbr.rel (0) target = $region5
    $region4: #{tpu_custom_call.1} parent=1 // pred_region
      %s15 = ssub.s32 256, 256
      %16 = vsyncadd [#allocation3], %s15
      %s17 = sshll.u32 [#allocation2], 4
      %s18 = int_to_ptr.vmem [resolvable:$true] %s17
      %23 = dma.hbm_to_vmem [thread:$0]  %s0, 256, %s18, [#allocation3], 128, 128, 8
    $region5: #{tpu_custom_call.1} parent=1 // pred_fallthru
      _
    // Predicated region
    $region6: #{tpu_custom_call.1} parent=1 // pred_check
      _
    $region7: #{tpu_custom_call.1} parent=1 // pred_check_branch
      %25 = sbr.rel (0) target = $region9
    $region8: #{tpu_custom_call.1} parent=1 // pred_region
      %s27 = ssub.s32 512, 512
      %28 = vsyncadd [#allocation5], %s27
      %s29 = sshll.u32 [#allocation4], 4
      %s30 = int_to_ptr.vmem [resolvable:$true] %s29
      %35 = dma.hbm_to_vmem [thread:$0]  %s1, 512, %s30, [#allocation5], 128, 128, 8
    $region9: #{tpu_custom_call.1} parent=1 // pred_fallthru
      _
    // Predicated region
    $region10: #{tpu_custom_call.1} parent=1 // pred_check
      _
    $region11: #{tpu_custom_call.1} parent=1 // pred_check_branch
      %37 = sbr.rel (0) target = $region13
    $region12: #{tpu_custom_call.1} parent=1 // pred_region
      _
    $region13: #{tpu_custom_call.1} parent=1 // pred_fallthru
      _
    // Predicated region
    $region14: #{tpu_custom_call.1} parent=1 // pred_check
      _
    $region15: #{tpu_custom_call.1} parent=1 // pred_check_branch
      %39 = sbr.rel (0) target = $region17
    $region16: #{tpu_custom_call.1} parent=1 // pred_region
      %s41 = ssub.s32 512, 512
      %42 = vsyncadd [#allocation5], %s41
      %s43 = sshll.u32 [#allocation6], 4
      %s44 = int_to_ptr.vmem [resolvable:$true] %s43
      %49 = dma.hbm_to_vmem [thread:$0]  %s3, 512, %s44, [#allocation5], 128, 128, 8
    $region17: #{tpu_custom_call.1} parent=1 // pred_fallthru
      _
    // Predicated region
    $region18: #{tpu_custom_call.1} parent=1 // pred_check
      _
    $region19: #{tpu_custom_call.1} parent=1 // pred_check_branch
      %51 = sbr.rel (0) target = $region21
    $region20: #{tpu_custom_call.1} parent=1 // pred_region
      _
    $region21: #{tpu_custom_call.1} parent=1 // pred_fallthru
      _
    // Predicated region
    $region22: #{tpu_custom_call.1} parent=1 // pred_check
      _
    $region23: #{tpu_custom_call.1} parent=1 // pred_check_branch
      %53 = sbr.rel (0) target = $region25
    $region24: #{tpu_custom_call.1} parent=1 // pred_region
      %54 = dma.done [#allocation3], 256
    $region25: #{tpu_custom_call.1} parent=1 // pred_fallthru
      _
    // Predicated region
    $region26: #{tpu_custom_call.1} parent=1 // pred_check
      _
    $region27: #{tpu_custom_call.1} parent=1 // pred_check_branch
      %56 = sbr.rel (0) target = $region29
    $region28: #{tpu_custom_call.1} parent=1 // pred_region
      %57 = dma.done [#allocation5], 512
    $region29: #{tpu_custom_call.1} parent=1 // pred_fallthru
      _
    // Predicated region
    $region30: #{tpu_custom_call.1} parent=1 // pred_check
      _
    $region31: #{tpu_custom_call.1} parent=1 // pred_check_branch
      %59 = sbr.rel (0) target = $region33
    $region32: #{tpu_custom_call.1} parent=1 // pred_region
      %60 = dma.done [#allocation5], 512
    $region33: #{tpu_custom_call.1} parent=1 // pred_fallthru
      _
    %v61 = vld [vmem:[#allocation2] sm:$0xff]
    %v62 = vld [vmem:[#allocation2 + $0x8] sm:$0xff]
    %v63 = vld [vmem:[#allocation4] sm:$0xff]
    %v64 = vld [vmem:[#allocation4 + $0x8] sm:$0xff]
    %v65 = vld [vmem:[#allocation4 + $0x10] sm:$0xff]
    %v66 = vld [vmem:[#allocation4 + $0x18] sm:$0xff]
    %v67 = vld [vmem:[%s2] sm:$0x1]
    %v69 = vlaneseq
    %v70 = vshrl.u32 %v69, 7
    %v71 = vsub.s32 0, %v70
    %v72 = vrot.slane %v67, %v71
    %vm74 = vcmask 261120
    %v76 = vsel %vm74, %v61, 0
    %v79 = vsel %vm74, %v62, 0
    %81 = vmatprep.subr.mxu0 0.0
    %82 = vmatpush1.msra.mxu0 0.0
    %83 = vmatprep.subr.mxu0 0.0
    %84 = vmatpush1.msra.mxu0 0.0
    %85 = vmatprep.subr.mxu0 0.0
    %86 = vmatpush1.msra.mxu0 0.0
    %87 = vmatprep.subr.mxu0 0.0
    %88 = vmatpush1.msra.mxu0 0.0
    %89 = vmatprep.subr.mxu0 0.0
    %90 = vmatpush1.msra.mxu0 0.0
    %91 = vmatprep.subr.mxu0 0.0
    %92 = vmatpush1.msra.mxu0 0.0
    %93 = vmatprep.subr.mxu0 0.0
    %94 = vmatpush1.msra.mxu0 0.0
    %95 = vmatprep.subr.mxu0 0.0
    %96 = vmatpush1.msra.mxu0 0.0
    %97 = vmatprep.subr.mxu0 0.0
    %98 = vmatpush1.msra.mxu0 0.0
    %99 = vmatprep.subr.mxu0 0.0
    %100 = vmatpush1.msra.mxu0 0.0
    %101 = vmatprep.subr.mxu0 0.0
    %102 = vmatpush1.msra.mxu0 0.0
    %103 = vmatprep.subr.mxu0 0.0
    %104 = vmatpush1.msra.mxu0 0.0
    %105 = vmatprep.subr.mxu0 0.0
    %106 = vmatpush1.msra.mxu0 %v66
    %107 = vmatprep.subr.mxu0 0.0
    %108 = vmatpush1.msra.mxu0 %v65
    %109 = vmatprep.subr.mxu0 0.0
    %110 = vmatpush1.msra.mxu0 %v64
    %111 = vmatprep.subr.mxu0 0.0
    %112 = vmatpush1.msra.mxu0 %v63
    %113 = vmatprep.subr.mxu0 0.0
    %114 = vmatpush2.msra.mxu0 0.0
    %115 = vmatprep.subr.mxu0 0.0
    %116 = vmatpush2.msra.mxu0 0.0
    %117 = vmatprep.subr.mxu0 0.0
    %118 = vmatpush2.msra.mxu0 0.0
    %119 = vmatprep.subr.mxu0 0.0
    %120 = vmatpush2.msra.mxu0 0.0
    %121 = vmatprep.subr.mxu0 0.0
    %122 = vmatpush2.msra.mxu0 0.0
    %123 = vmatprep.subr.mxu0 0.0
    %124 = vmatpush2.msra.mxu0 0.0
    %125 = vmatprep.subr.mxu0 0.0
    %126 = vmatpush2.msra.mxu0 0.0
    %127 = vmatprep.subr.mxu0 0.0
    %128 = vmatpush2.msra.mxu0 0.0
    %129 = vmatprep.subr.mxu0 0.0
    %130 = vmatpush2.msra.mxu0 0.0
    %131 = vmatprep.subr.mxu0 0.0
    %132 = vmatpush2.msra.mxu0 0.0
    %133 = vmatprep.subr.mxu0 0.0
    %134 = vmatpush2.msra.mxu0 0.0
    %135 = vmatprep.subr.mxu0 0.0
    %136 = vmatpush2.msra.mxu0 0.0
    %137 = vmatprep.subr.mxu0 0.0
    %138 = vmatpush2.msra.mxu0 0.0
    %139 = vmatprep.subr.mxu0 0.0
    %140 = vmatpush2.msra.mxu0 0.0
    %141 = vmatprep.subr.mxu0 0.0
    %142 = vmatpush2.msra.mxu0 0.0
    %143 = vmatprep.subr.mxu0 0.0
    %144 = vmatpush2.msra.mxu0 0.0
    %145 = vmatprep.mubr.f32.mxu0 0.0
    %146 = vmatmul.mubr.f32.gmra.mxu0 %v76
    %v147 = vpop.f32.mrf.mxu0
    %v148 = vadd.f32 %v72, %v147
    %v149 = vpop.f32.mrf.mxu0
    %150 = vmatprep.mubr.f32.mxu0 0.0
    %151 = vmatmul.mubr.f32.gmra.mxu0 %v79
    %v152 = vpop.f32.mrf.mxu0
    %v153 = vadd.f32 %v72, %v152
    %v154 = vpop.f32.mrf.mxu0
    %155 = vdwg.mxu0
    %v156 = vmul.f32 %v148, 0.2
    %v157 = vmul.f32 %v153, 0.2
    %v158 = vmax.f32 %v148, %v156
    %v159 = vmax.f32 %v153, %v157
    %v160 = vld [vmem:[#allocation6] sm:$0xff]
    %v161 = vld [vmem:[#allocation6 + $0x8] sm:$0xff]
    %v162 = vld [vmem:[#allocation6 + $0x10] sm:$0xff]
    %v163 = vld [vmem:[#allocation6 + $0x18] sm:$0xff]
    %v164 = vld [vmem:[%s4] sm:$0x1]
    %v166 = vlaneseq
    %v167 = vshrl.u32 %v166, 7
    %v168 = vsub.s32 0, %v167
    %v169 = vrot.slane %v164, %v168
    %v172 = vsel %vm74, %v158, 0
    %v175 = vsel %vm74, %v159, 0
    %177 = vmatprep.subr.mxu0 0.0
    %178 = vmatpush1.msra.mxu0 0.0
    %179 = vmatprep.subr.mxu0 0.0
    %180 = vmatpush1.msra.mxu0 0.0
    %181 = vmatprep.subr.mxu0 0.0
    %182 = vmatpush1.msra.mxu0 0.0
    %183 = vmatprep.subr.mxu0 0.0
    %184 = vmatpush1.msra.mxu0 0.0
    %185 = vmatprep.subr.mxu0 0.0
    %186 = vmatpush1.msra.mxu0 0.0
    %187 = vmatprep.subr.mxu0 0.0
    %188 = vmatpush1.msra.mxu0 0.0
    %189 = vmatprep.subr.mxu0 0.0
    %190 = vmatpush1.msra.mxu0 0.0
    %191 = vmatprep.subr.mxu0 0.0
    %192 = vmatpush1.msra.mxu0 0.0
    %193 = vmatprep.subr.mxu0 0.0
    %194 = vmatpush1.msra.mxu0 0.0
    %195 = vmatprep.subr.mxu0 0.0
    %196 = vmatpush1.msra.mxu0 0.0
    %197 = vmatprep.subr.mxu0 0.0
    %198 = vmatpush1.msra.mxu0 0.0
    %199 = vmatprep.subr.mxu0 0.0
    %200 = vmatpush1.msra.mxu0 0.0
    %201 = vmatprep.subr.mxu0 0.0
    %202 = vmatpush1.msra.mxu0 %v163
    %203 = vmatprep.subr.mxu0 0.0
    %204 = vmatpush1.msra.mxu0 %v162
    %205 = vmatprep.subr.mxu0 0.0
    %206 = vmatpush1.msra.mxu0 %v161
    %207 = vmatprep.subr.mxu0 0.0
    %208 = vmatpush1.msra.mxu0 %v160
    %209 = vmatprep.subr.mxu0 0.0
    %210 = vmatpush2.msra.mxu0 0.0
    %211 = vmatprep.subr.mxu0 0.0
    %212 = vmatpush2.msra.mxu0 0.0
    %213 = vmatprep.subr.mxu0 0.0
    %214 = vmatpush2.msra.mxu0 0.0
    %215 = vmatprep.subr.mxu0 0.0
    %216 = vmatpush2.msra.mxu0 0.0
    %217 = vmatprep.subr.mxu0 0.0
    %218 = vmatpush2.msra.mxu0 0.0
    %219 = vmatprep.subr.mxu0 0.0
    %220 = vmatpush2.msra.mxu0 0.0
    %221 = vmatprep.subr.mxu0 0.0
    %222 = vmatpush2.msra.mxu0 0.0
    %223 = vmatprep.subr.mxu0 0.0
    %224 = vmatpush2.msra.mxu0 0.0
    %225 = vmatprep.subr.mxu0 0.0
    %226 = vmatpush2.msra.mxu0 0.0
    %227 = vmatprep.subr.mxu0 0.0
    %228 = vmatpush2.msra.mxu0 0.0
    %229 = vmatprep.subr.mxu0 0.0
    %230 = vmatpush2.msra.mxu0 0.0
    %231 = vmatprep.subr.mxu0 0.0
    %232 = vmatpush2.msra.mxu0 0.0
    %233 = vmatprep.subr.mxu0 0.0
    %234 = vmatpush2.msra.mxu0 0.0
    %235 = vmatprep.subr.mxu0 0.0
    %236 = vmatpush2.msra.mxu0 0.0
    %237 = vmatprep.subr.mxu0 0.0
    %238 = vmatpush2.msra.mxu0 0.0
    %239 = vmatprep.subr.mxu0 0.0
    %240 = vmatpush2.msra.mxu0 0.0
    %241 = vmatprep.mubr.f32.mxu0 0.0
    %242 = vmatmul.mubr.f32.gmra.mxu0 %v172
    %v243 = vpop.f32.mrf.mxu0
    %v244 = vadd.f32 %v169, %v243
    %v245 = vpop.f32.mrf.mxu0
    %246 = vmatprep.mubr.f32.mxu0 0.0
    %247 = vmatmul.mubr.f32.gmra.mxu0 %v175
    %v248 = vpop.f32.mrf.mxu0
    %v249 = vadd.f32 %v169, %v248
    %v250 = vpop.f32.mrf.mxu0
    %251 = vdwg.mxu0
    %252 = vmax.xlane.f32.xlu0 %v244
    %v253 = vpop.xlane.xlu0 %252
    %254 = vmax.xlane.f32.xlu0 %v249
    %v255 = vpop.xlane.xlu0 %254
    %v256 = vsub.f32 %v244, %v253
    %v257 = vsub.f32 %v249, %v255
    %v258 = vmul.f32 %v256, 1.442695
    %v259 = vpow.pop %v258
    %v260 = vmul.f32 %v257, 1.442695
    %v261 = vpow.pop %v260
    %262 = vadd.xlane.f32.xlu0 %v259
    %v263 = vpop.xlane.xlu0 %262
    %264 = vadd.xlane.f32.xlu0 %v261
    %v265 = vpop.xlane.xlu0 %264
    %v266 = vrcp.pop %v263
    %v267 = vmul.f32 %v259, %v266
    %v268 = vrcp.pop %v265
    %v269 = vmul.f32 %v261, %v268
    %vm270 = vcmask 15360
    %271 = vst.msk [vmem:[%s5] sm:$0xff] %vm270, %v267
    %272 = vst.msk [vmem:[%s5 + $0x8] sm:$0xff] %vm270, %v269
    // Predicated region
    $region34: #{tpu_custom_call.1} parent=1 // pred_check
      _
    $region35: #{tpu_custom_call.1} parent=1 // pred_check_branch
      %274 = sbr.rel (0) target = $region37
    $region36: #{tpu_custom_call.1} parent=1 // pred_region
      _
    $region37: #{tpu_custom_call.1} parent=1 // pred_fallthru
      _
    // Predicated region
    $region38: #{tpu_custom_call.1} parent=1 // pred_check
      _
    $region39: #{tpu_custom_call.1} parent=1 // pred_check_branch
      %276 = sbr.rel (0) target = $region41
    $region40: #{tpu_custom_call.1} parent=1 // pred_region
      _
    $region41: #{tpu_custom_call.1} parent=1 // pred_fallthru
      _
    %277 = vsyncpa [#allocation3], 1
    %278 = vsyncpa [#allocation5], 1

</llo_original>
